<compile_context>
chip_gen: v5e
topology: v5e:2x2
jax: 0.10.0
libtpu: 0.0.40
codegen_flags: <defaults>
</compile_context>

<pallas_src>
import functools

import jax
import jax.numpy as jnp
from jax.experimental import pallas as pl
from jax.experimental.pallas import tpu as pltpu

LANE = 128
SUBLANE = 8


def _round_up(x, m):
    return (x + m - 1) // m * m


def _pad_axis(x, axis, target):
    pad = target - x.shape[axis]
    if pad == 0:
        return x
    cfg = [(0, 0)] * x.ndim
    cfg[axis] = (0, pad)
    return jnp.pad(x, cfg)


# ----------------------------- Pallas kernel ------------------------------ #

def _fused_block_kernel(x_ref, w_ref, s_ref, b_ref, *rest,
                        apply_relu, res_mode, out_dtype):
    """Single-GEMM conv + BN affine + optional residual + ReLU.

    x_ref:  (1, TP, K*Cin_p)   bf16 im2col tile
    w_ref:  (K*Cin_p, Cout_p)  bf16 folded conv weights
    s_ref/b_ref: (1, Cout_p)   f32 BN scale/bias
    rest (by res_mode):
      "none":  (o_ref,)
      "plain": (res_ref[1,TP,Cout_p], o_ref)
      "proj":  (xid_ref[1,TP,Cin_p], wid_ref[Cin_p,Cout_p],
                sid_ref[1,Cout_p], bid_ref[1,Cout_p], o_ref)
    """
    o_ref = rest[-1]

    # One deep-K MXU GEMM (K = 9*Cin_p), f32 accumulation.
    acc = jnp.dot(x_ref[0], w_ref[...], preferred_element_type=jnp.float32)
    y = acc * s_ref[...] + b_ref[...]                  # BN folded affine (f32)

    if res_mode == "plain":
        y = y + rest[0][0].astype(jnp.float32)
    elif res_mode == "proj":
        xid_ref, wid_ref, sid_ref, bid_ref = rest[:4]
        idv = jnp.dot(xid_ref[0], wid_ref[...],
                      preferred_element_type=jnp.float32)
        y = y + idv * sid_ref[...] + bid_ref[...]

    if apply_relu:
        y = jnp.maximum(y, 0.0)
    o_ref[0] = y.astype(out_dtype)


def fused_conv_gemm(x_cols, w, scale, bias, *, relu, p_tile,
                    residual=None, id_cols=None, id_w=None,
                    id_scale=None, id_bias=None):
    """x_cols: (N, P_pad, K*Cin_p); w: (K*Cin_p, Cout_p); scale/bias: (1, Cout_p)."""
    n, p_pad, kc = x_cols.shape
    cout = w.shape[-1]
    assert p_pad % p_tile == 0 and p_tile % SUBLANE == 0
    grid = (n, p_pad // p_tile)

    in_specs = [
        pl.BlockSpec((1, p_tile, kc), lambda i, j: (i, j, 0)),
        pl.BlockSpec((kc, cout), lambda i, j: (0, 0)),
        pl.BlockSpec((1, cout), lambda i, j: (0, 0)),
        pl.BlockSpec((1, cout), lambda i, j: (0, 0)),
    ]
    args = [x_cols, w, scale, bias]

    if id_cols is not None:
        res_mode = "proj"
        cid = id_cols.shape[-1]
        in_specs += [
            pl.BlockSpec((1, p_tile, cid), lambda i, j: (i, j, 0)),
            pl.BlockSpec((cid, cout), lambda i, j: (0, 0)),
            pl.BlockSpec((1, cout), lambda i, j: (0, 0)),
            pl.BlockSpec((1, cout), lambda i, j: (0, 0)),
        ]
        args += [id_cols, id_w, id_scale, id_bias]
    elif residual is not None:
        res_mode = "plain"
        in_specs.append(pl.BlockSpec((1, p_tile, cout), lambda i, j: (i, j, 0)))
        args.append(residual)
    else:
        res_mode = "none"

    kernel = functools.partial(
        _fused_block_kernel, apply_relu=relu, res_mode=res_mode,
        out_dtype=x_cols.dtype)

    return pl.pallas_call(
        kernel,
        out_shape=jax.ShapeDtypeStruct((n, p_pad, cout), x_cols.dtype),
        grid_spec=pltpu.PrefetchScalarGridSpec(
            num_scalar_prefetch=0,
            grid=grid,
            in_specs=in_specs,
            out_specs=pl.BlockSpec((1, p_tile, cout), lambda i, j: (i, j, 0)),
        ),
        compiler_params=pltpu.CompilerParams(
            dimension_semantics=("parallel", "parallel"),
            vmem_limit_bytes=64 * 1024 * 1024),
    )(*args)


# ------------------------------- JAX glue --------------------------------- #

def _im2col_3x3_flat(x_nhwc, stride):
    """3x3, padding=1 im2col in single-GEMM layout: (N,H,W,C) -> (N, Ho*Wo, 9*C)."""
    n, h, w, c = x_nhwc.shape
    ho = (h - 1) // stride + 1
    wo = (w - 1) // stride + 1
    xp = jnp.pad(x_nhwc, ((0, 0), (1, 1), (1, 1), (0, 0)))
    taps = []
    for ky in range(3):
        for kx in range(3):
            taps.append(xp[:, ky:ky + stride * (ho - 1) + 1:stride,
                           kx:kx + stride * (wo - 1) + 1:stride, :])
    cols = jnp.concatenate(taps, axis=-1)            # (N, Ho, Wo, 9*C)
    return cols.reshape(n, ho * wo, 9 * c), ho, wo


def _fold_bn(gamma, beta, mean, var, c_pad, eps=1e-5):
    scale = gamma / jnp.sqrt(var + eps)
    bias = beta - mean * scale
    scale = jnp.pad(scale, (0, c_pad - scale.shape[0]))
    bias = jnp.pad(bias, (0, c_pad - bias.shape[0]))
    return (scale.reshape(1, -1).astype(jnp.float32),
            bias.reshape(1, -1).astype(jnp.float32))


def _prep_w3x3(w, ci_pad, co_pad, dtype):
    """(Cout,Cin,3,3) -> (9*Cin_pad, Cout_pad); row = (ky*3+kx)*Cin_pad + ci."""
    co, ci = w.shape[0], w.shape[1]
    wt = jnp.transpose(w, (2, 3, 1, 0))                       # (3,3,Ci,Co)
    wt = jnp.pad(wt, ((0, 0), (0, 0), (0, ci_pad - ci), (0, co_pad - co)))
    return wt.reshape(9 * ci_pad, co_pad).astype(dtype)


def _choose_p_tile(p, max_tile=256):
    p8 = _round_up(p, SUBLANE)
    if p8 <= max_tile:
        return p8, p8
    p_pad = _round_up(p, max_tile)
    return p_pad, max_tile


def init_params(key, cin, cout, expansion):
    keys = jax.random.split(key, 8)

    def conv_w(k, co, ci, kh, kw):
        return 0.1 * jax.random.normal(k, (co, ci, kh, kw), jnp.float32)

    def bn(k, c):
        k1, k2, k3 = jax.random.split(k, 3)
        gamma = 1.0 + 0.1 * jax.random.normal(k1, (c,), jnp.float32)
        beta = 0.1 * jax.random.normal(k2, (c,), jnp.float32)
        mean = 0.1 * jax.random.normal(k3, (c,), jnp.float32)
        var = 1.5 * jnp.ones((c,), jnp.float32)
        return (gamma, beta, mean, var)

    params = {
        "w1": conv_w(keys[0], cout, cin, 3, 3),
        "bn1": bn(keys[1], cout),
        "w2": conv_w(keys[2], cout, cout, 3, 3),
        "bn2": bn(keys[3], cout),
    }
    if expansion:
        params["w_id"] = conv_w(keys[4], cout, cin, 1, 1)
        params["bn_id"] = bn(keys[5], cout)
    return params


def basic_block_forward(x_nchw, params, *, stride, expansion,
                        compute_dtype=jnp.bfloat16):
    x = jnp.transpose(x_nchw, (0, 2, 3, 1))          # NCHW -> NHWC
    n, h, w, cin = x.shape
    cout = params["w1"].shape[0]
    cin_p = _round_up(cin, LANE)
    cout_p = _round_up(cout, LANE)

    # lane-dense, bf16 activations
    x = _pad_axis(x, 3, cin_p).astype(compute_dtype)

    # weights in single-GEMM layout, bf16; BN folded to f32 affine
    w1 = _prep_w3x3(params["w1"], cin_p, cout_p, compute_dtype)
    w2 = _prep_w3x3(params["w2"], cout_p, cout_p, compute_dtype)
    s1, b1 = _fold_bn(*params["bn1"], cout_p)
    s2, b2 = _fold_bn(*params["bn2"], cout_p)

    # --- conv1 + bn1 + relu (fused, single GEMM) ---
    x_cols, ho, wo = _im2col_3x3_flat(x, stride)     # (N, P, 9*Cin_p)
    p = ho * wo
    p_pad, p_tile = _choose_p_tile(p)
    x_cols = _pad_axis(x_cols, 1, p_pad)
    out1 = fused_conv_gemm(x_cols, w1, s1, b1, relu=True, p_tile=p_tile)
    out1_hw = out1[:, :p, :].reshape(n, ho, wo, cout_p)

    # --- conv2 + bn2 + identity (fused in-kernel) + add + relu ---
    out1_cols, _, _ = _im2col_3x3_flat(out1_hw, 1)   # (N, P, 9*Cout_p)
    out1_cols = _pad_axis(out1_cols, 1, p_pad)

    if expansion:
        wid = params["w_id"][:, :, 0, 0].T                       # (Cin, Cout)
        wid = jnp.pad(wid, ((0, cin_p - cin), (0, cout_p - cout))
                      ).astype(compute_dtype)                    # (Cin_p, Cout_p)
        sid, bid = _fold_bn(*params["bn_id"], cout_p)
        x_id = x[:, ::stride, ::stride, :].reshape(n, p, cin_p)
        x_id = _pad_axis(x_id, 1, p_pad)
        out = fused_conv_gemm(out1_cols, w2, s2, b2, relu=True, p_tile=p_tile,
                              id_cols=x_id, id_w=wid,
                              id_scale=sid, id_bias=bid)
    else:
        assert stride == 1 and cin == cout, (
            "non-expansion identity requires stride==1 and cin==cout")
        res = _pad_axis(x.reshape(n, p, cin_p), 1, p_pad)
        out = fused_conv_gemm(out1_cols, w2, s2, b2, relu=True, p_tile=p_tile,
                              residual=res)

    out = out[:, :p, :cout].reshape(n, ho, wo, cout)
    return jnp.transpose(out, (0, 3, 1, 2)).astype(jnp.float32)   # -> NCHW


# ----------------------- pure-JAX reference (check) ------------------------ #

def reference_forward(x_nchw, params, *, stride, expansion):
    def conv(x, w, s, pad):
        return jax.lax.conv_general_dilated(
            x, w, (s, s), [(pad, pad), (pad, pad)],
            dimension_numbers=("NCHW", "OIHW", "NCHW"))

    def bn(x, p):
        gamma, beta, mean, var = p
        sc = gamma / jnp.sqrt(var + 1e-5)
        bi = beta - mean * sc
        return x * sc[None, :, None, None] + bi[None, :, None, None]

    out = jax.nn.relu(bn(conv(x_nchw, params["w1"], stride, 1), params["bn1"]))
    out = bn(conv(out, params["w2"], 1, 1), params["bn2"])
    if expansion:
        identity = bn(conv(x_nchw, params["w_id"], stride, 0), params["bn_id"])
    else:
        identity = x_nchw
    return jax.nn.relu(identity + out)


# --------------------------------- main ------------------------------------ #

if __name__ == "__main__":
    key = jax.random.PRNGKey(0)

    # Test 1: BasicBlock((4, 8), strides=2, expansion=True)
    k1, k2, k3, k4 = jax.random.split(key, 4)
    N, Cin, H, W = 2, 4, 16, 16
    Cout, stride, expansion = 8, 2, True
    x = jax.random.normal(k1, (N, Cin, H, W), jnp.float32)
    params = init_params(k2, Cin, Cout, expansion)

    out = basic_block_forward(x, params, stride=stride, expansion=expansion)
    out = jax.block_until_ready(out)
    ref = reference_forward(x, params, stride=stride, expansion=expansion)
    assert out.shape == ref.shape, (out.shape, ref.shape)
    max_diff = float(jnp.max(jnp.abs(out - ref)))
    assert jnp.allclose(out, ref, rtol=1e-1, atol=1e-1), max_diff

    # Test 2: BasicBlock((8, 8), strides=1, expansion=False) -> plain residual
    x2 = jax.random.normal(k3, (2, 8, 16, 16), jnp.float32)
    params2 = init_params(k4, 8, 8, False)
    out2 = basic_block_forward(x2, params2, stride=1, expansion=False)
    out2 = jax.block_until_ready(out2)
    ref2 = reference_forward(x2, params2, stride=1, expansion=False)
    assert out2.shape == ref2.shape, (out2.shape, ref2.shape)
    max_diff2 = float(jnp.max(jnp.abs(out2 - ref2)))
    assert jnp.allclose(out2, ref2, rtol=1e-1, atol=1e-1), max_diff2

    print("KERNEL_OK")
</pallas_src>

<mosaic_0001>
module attributes {stable_mosaic.version = 11 : i64} {
  func.func @_fused_block_kernel(%arg0: i32, %arg1: i32, %arg2: memref<1x64x1152xbf16, #tpu.memory_space<vmem>>, %arg3: memref<1152x128xbf16, #tpu.memory_space<vmem>>, %arg4: memref<1x128xf32, #tpu.memory_space<vmem>>, %arg5: memref<1x128xf32, #tpu.memory_space<vmem>>, %arg6: memref<1x64x128xbf16, #tpu.memory_space<vmem>>) attributes {dimension_semantics = [#tpu.dimension_semantics<parallel>, #tpu.dimension_semantics<parallel>], iteration_bounds = array<i64: 2, 1>, scalar_prefetch = 0 : i64, scratch_operands = 0 : i64, tpu.core_type = #tpu.core_type<tc>, window_params = [{transform_indices = @transform_0, window_bounds = array<i64: 1, 64, 1152>}, {pipeline_mode = #tpu.pipeline_mode<synchronous>, transform_indices = @transform_1, window_bounds = array<i64: 1152, 128>}, {pipeline_mode = #tpu.pipeline_mode<synchronous>, transform_indices = @transform_2, window_bounds = array<i64: 1, 128>}, {pipeline_mode = #tpu.pipeline_mode<synchronous>, transform_indices = @transform_3, window_bounds = array<i64: 1, 128>}, {transform_indices = @transform_4, window_bounds = array<i64: 1, 64, 128>}]} {
    %c0 = arith.constant 0 : index
    %c0_0 = arith.constant 0 : index
    %c0_1 = arith.constant 0 : index
    %0 = vector.load %arg2[%c0, %c0_0, %c0_1] : memref<1x64x1152xbf16, #tpu.memory_space<vmem>>, vector<1x64x1152xbf16>
    %1 = vector.shape_cast %0 : vector<1x64x1152xbf16> to vector<64x1152xbf16>
    %c0_2 = arith.constant 0 : index
    %c0_3 = arith.constant 0 : index
    %2 = vector.load %arg3[%c0_2, %c0_3] : memref<1152x128xbf16, #tpu.memory_space<vmem>>, vector<1152x128xbf16>
    %cst = arith.constant dense<0.000000e+00> : vector<64x128xf32>
    %3 = tpu.matmul %1, %2, %cst {dimension_numbers = #tpu.dot_dimension_numbers<[1], [0], [0], [1], [0, 0, 1, 1], [], []>} : vector<64x1152xbf16>, vector<1152x128xbf16>, vector<64x128xf32> -> vector<64x128xf32>
    %c0_4 = arith.constant 0 : index
    %c0_5 = arith.constant 0 : index
    %4 = vector.load %arg4[%c0_4, %c0_5] : memref<1x128xf32, #tpu.memory_space<vmem>>, vector<1x128xf32>
    %5 = vector.broadcast %4 : vector<1x128xf32> to vector<64x128xf32>
    %6 = arith.mulf %3, %5 : vector<64x128xf32>
    %c0_6 = arith.constant 0 : index
    %c0_7 = arith.constant 0 : index
    %7 = vector.load %arg5[%c0_6, %c0_7] : memref<1x128xf32, #tpu.memory_space<vmem>>, vector<1x128xf32>
    %8 = vector.broadcast %7 : vector<1x128xf32> to vector<64x128xf32>
    %9 = arith.addf %6, %8 : vector<64x128xf32>
    %cst_8 = arith.constant 0.000000e+00 : f32
    %10 = vector.broadcast %cst_8 : f32 to vector<64x128xf32>
    %11 = arith.maximumf %9, %10 : vector<64x128xf32>
    %12 = arith.truncf %11 : vector<64x128xf32> to vector<64x128xbf16>
    %c0_9 = arith.constant 0 : index
    %c0_10 = arith.constant 0 : index
    %c0_11 = arith.constant 0 : index
    %13 = vector.load %arg6[%c0_9, %c0_10, %c0_11] : memref<1x64x128xbf16, #tpu.memory_space<vmem>>, vector<1x64x128xbf16>
    %14 = vector.shape_cast %13 : vector<1x64x128xbf16> to vector<64x128xbf16>
    %15 = vector.shape_cast %12 : vector<64x128xbf16> to vector<1x64x128xbf16>
    tpu.vector_store %arg6[%c0_9, %c0_10, %c0_11], %15 {strides = array<i32>} : memref<1x64x128xbf16, #tpu.memory_space<vmem>>, vector<1x64x128xbf16>,
    return
  }
  func.func @transform_0(%arg0: i32, %arg1: i32) -> (i32, i32, i32) {
    %c0_i32 = arith.constant 0 : i32
    %c0_i32_0 = arith.constant 0 : i32
    return %arg0, %arg1, %c0_i32 : i32, i32, i32
  }
  func.func @transform_1(%arg0: i32, %arg1: i32) -> (i32, i32) {
    %c0_i32 = arith.constant 0 : i32
    %c0_i32_0 = arith.constant 0 : i32
    %c0_i32_1 = arith.constant 0 : i32
    return %c0_i32, %c0_i32_0 : i32, i32
  }
  func.func @transform_2(%arg0: i32, %arg1: i32) -> (i32, i32) {
    %c0_i32 = arith.constant 0 : i32
    %c0_i32_0 = arith.constant 0 : i32
    %c0_i32_1 = arith.constant 0 : i32
    return %c0_i32, %c0_i32_0 : i32, i32
  }
  func.func @transform_3(%arg0: i32, %arg1: i32) -> (i32, i32) {
    %c0_i32 = arith.constant 0 : i32
    %c0_i32_0 = arith.constant 0 : i32
    %c0_i32_1 = arith.constant 0 : i32
    return %c0_i32, %c0_i32_0 : i32, i32
  }
  func.func @transform_4(%arg0: i32, %arg1: i32) -> (i32, i32, i32) {
    %c0_i32 = arith.constant 0 : i32
    %c0_i32_0 = arith.constant 0 : i32
    return %arg0, %arg1, %c0_i32 : i32, i32, i32
  }
}

</mosaic_0001>

<llo_original>
// kernel: tpu_custom_call.1
$region0: #{tpu_custom_call.1}
  #allocation0 [shape = 'u32[]', space=smem, size = 0x4, offset = 0x4, fixed_abs, tag = 'smem constant byte address 0x4 - core index']
  #allocation1 [shape = 'u32[72,128]{1,0:T(1,128)}', space=vmem, size = 0x9000, scoped, tag = 'internal scratch']
  %s0 = inlined_call_operand.hbm [shape: bf16[2,64,1152], index: 0, kind: input, shape index: {}]
  %s1 = inlined_call_operand.hbm [shape: bf16[1152,128], index: 1, kind: input, shape index: {}]
  %s2 = inlined_call_operand.vmem [shape: f32[1,128], index: 2, kind: input, shape index: {}]
  %s3 = inlined_call_operand.vmem [shape: f32[1,128], index: 3, kind: input, shape index: {}]
  %s4 = inlined_call_operand.hbm [shape: bf16[2,64,128], index: 4, kind: output, shape index: {}]
  %s5 = sld [smem:[#allocation0]]
  $region57: #{tpu_custom_call.1} parent=0
    _
  %s7 = ssub.s32 1, %s5
  %s8 = scalar_select 0, %s7, %s5
  $region1: #{tpu_custom_call.1} parent=0
    #allocation2 [shape = 'u8[294912]{0}', space=vmem, size = 0x48000, scoped, tag = 'input window, operand 0']
    #allocation3 [shape = 's32[2]{0}', space=sflag, size = 0x8, scoped, tag = 'scoped memory for tpu_custom_call.1']
    #allocation4 [shape = 's32[2]{0}', space=sflag, size = 0x8, scoped, tag = 'scoped memory for tpu_custom_call.1']
    #allocation5 [shape = 'u8[294912]{0}', space=vmem, size = 0x48000, scoped, tag = 'input window, operand 1, single buffered']
    #allocation6 [shape = 's32[1]{0}', space=sflag, size = 0x4, scoped, tag = 'scoped memory for tpu_custom_call.1']
    #allocation7 [shape = 'u8[32768]{0}', space=vmem, size = 0x8000, scoped, tag = 'output window, operand 0']
    %9 = vsyncpa [#allocation3], 0
    %s10 = scalar_lea.sflag [#allocation3], 1
    %11 = vsyncpa %s10, 0
    %12 = vsyncpa [#allocation6], 0
    %13 = vsyncpa [#allocation4], 0
    %s14 = scalar_lea.sflag [#allocation4], 1
    %15 = vsyncpa %s14, 0
    loop: start=0, step=1, limit=4
    $region2: #{tpu_custom_call.1} parent=1 // loop_pre_header
      _
    $region3: #{tpu_custom_call.1} parent=1 // loop_header
      %s17 = sphi 0, %s21
      %p18 = scmp.ge.s32.totalorder %s17, 4
      %s24 = sphi 0, %s36
      %s25 = sphi 0, %s32
      %s26 = sphi 0, %s24
      %s27 = sphi 0, %s25
      %s28 = sphi 0, %s26
      %s29 = sphi 0, %s27
      %s41 = sphi 0, %s43
      %s44 = sphi 0, %s41
      %s45 = sphi 0, %s44
      %s61 = sphi 0, %s45
      %s65 = sphi 0, %s65
      %s67 = sphi 0, %s65
      %s68 = sphi 0, %s67
      %s82 = sphi 0, %s68
      %s86 = sphi 0, %s86
      %s88 = sphi 0, %s86
      %s89 = sphi 0, %s88
      %s103 = sphi 0, %s89
      %s107 = sphi 0, %s107
      %s109 = sphi 0, %s107
      %s110 = sphi 0, %s109
      %s124 = sphi 0, %s110
      %s132 = sphi 0, %s134
      %s135 = sphi 0, %s132
      %s136 = sphi 0, %s135
      %s152 = sphi 0, %s136
    $region4: #{tpu_custom_call.1} parent=1 // loop_header_branch
      %20 = sbr.rel (%p18) target = $region8
    $region5: #{tpu_custom_call.1} parent=1 // loop_body
      %s22 = ssub.s32 %s17, 1
      %s23 = ssub.s32 %s17, 2
      %s30 = sadd.s32 1, %s25
      %p31 = scmp.ge.s32.totalorder %s30, 1
      %s32 = scalar_select %p31, 0, %s30
      %s33 = sadd.s32 1, %s24
      %s34 = scalar_select %p31, %s33, %s24
      %p35 = scmp.ge.s32.totalorder %s34, 2
      %s36 = scalar_select %p35, 0, %s34
      %s37 = ssub.s32 %s24, %s36
      %s38 = ssub.s32 %s25, %s32
      %s39 = sor.u32 %s37, %s38
      %p40 = scmp.eq.s32.totalorder %s39, 0
      %s42 = sadd.s32 %s41, 1
      %s43 = scalar_select %p40, %s41, %s42
      %p46 = pneg %p40
      %p47 = scmp.eq.s32.totalorder %s17, 1
      %p48 = por %p46, %p47
      %p49 = scmp.ne.s32.totalorder %s41, %s44
      %p50 = scmp.eq.s32.totalorder %s17, 0
      %p51 = por %p49, %p50
      %p52 = scmp.ne.s32.totalorder %s41, %s44
      %p53 = scmp.eq.s32.totalorder %s22, 1
      %p54 = por %p52, %p53
      %p55 = scmp.ne.s32.totalorder %s44, %s45
      %p56 = scmp.eq.s32.totalorder %s22, 0
      %p57 = por %p55, %p56
      %p58 = scmp.ne.s32.totalorder %s44, %s45
      %p59 = scmp.eq.s32.totalorder %s23, 1
      %p60 = por %p58, %p59
      %p62 = scmp.ne.s32.totalorder %s45, %s61
      %p63 = scmp.eq.s32.totalorder %s23, 0
      %p64 = por %p62, %p63
      %s66 = sadd.s32 %s65, 1
      %p69 = scmp.eq.s32.totalorder %s17, 1
      %p70 = scmp.ne.s32.totalorder %s65, %s67
      %p71 = scmp.eq.s32.totalorder %s17, 0
      %p72 = por %p70, %p71
      %p73 = scmp.ne.s32.totalorder %s65, %s67
      %p74 = scmp.eq.s32.totalorder %s22, 1
      %p75 = por %p73, %p74
      %p76 = scmp.ne.s32.totalorder %s67, %s68
      %p77 = scmp.eq.s32.totalorder %s22, 0
      %p78 = por %p76, %p77
      %p79 = scmp.ne.s32.totalorder %s67, %s68
      %p80 = scmp.eq.s32.totalorder %s23, 1
      %p81 = por %p79, %p80
      %p83 = scmp.ne.s32.totalorder %s68, %s82
      %p84 = scmp.eq.s32.totalorder %s23, 0
      %p85 = por %p83, %p84
      %s87 = sadd.s32 %s86, 1
      %p90 = scmp.eq.s32.totalorder %s17, 1
      %p91 = scmp.ne.s32.totalorder %s86, %s88
      %p92 = scmp.eq.s32.totalorder %s17, 0
      %p93 = por %p91, %p92
      %p94 = scmp.ne.s32.totalorder %s86, %s88
      %p95 = scmp.eq.s32.totalorder %s22, 1
      %p96 = por %p94, %p95
      %p97 = scmp.ne.s32.totalorder %s88, %s89
      %p98 = scmp.eq.s32.totalorder %s22, 0
      %p99 = por %p97, %p98
      %p100 = scmp.ne.s32.totalorder %s88, %s89
      %p101 = scmp.eq.s32.totalorder %s23, 1
      %p102 = por %p100, %p101
      %p104 = scmp.ne.s32.totalorder %s89, %s103
      %p105 = scmp.eq.s32.totalorder %s23, 0
      %p106 = por %p104, %p105
      %s108 = sadd.s32 %s107, 1
      %p111 = scmp.eq.s32.totalorder %s17, 1
      %p112 = scmp.ne.s32.totalorder %s107, %s109
      %p113 = scmp.eq.s32.totalorder %s17, 0
      %p114 = por %p112, %p113
      %p115 = scmp.ne.s32.totalorder %s107, %s109
      %p116 = scmp.eq.s32.totalorder %s22, 1
      %p117 = por %p115, %p116
      %p118 = scmp.ne.s32.totalorder %s109, %s110
      %p119 = scmp.eq.s32.totalorder %s22, 0
      %p120 = por %p118, %p119
      %p121 = scmp.ne.s32.totalorder %s109, %s110
      %p122 = scmp.eq.s32.totalorder %s23, 1
      %p123 = por %p121, %p122
      %p125 = scmp.ne.s32.totalorder %s110, %s124
      %p126 = scmp.eq.s32.totalorder %s23, 0
      %p127 = por %p125, %p126
      %s128 = ssub.s32 %s24, %s36
      %s129 = ssub.s32 %s25, %s32
      %s130 = sor.u32 %s128, %s129
      %p131 = scmp.eq.s32.totalorder %s130, 0
      %s133 = sadd.s32 %s132, 1
      %s134 = scalar_select %p131, %s132, %s133
      %p137 = pneg %p131
      %p138 = scmp.eq.s32.totalorder %s17, 1
      %p139 = por %p137, %p138
      %p140 = scmp.ne.s32.totalorder %s132, %s135
      %p141 = scmp.eq.s32.totalorder %s17, 0
      %p142 = por %p140, %p141
      %p143 = scmp.ne.s32.totalorder %s132, %s135
      %p144 = scmp.eq.s32.totalorder %s22, 1
      %p145 = por %p143, %p144
      %p146 = scmp.ne.s32.totalorder %s135, %s136
      %p147 = scmp.eq.s32.totalorder %s22, 0
      %p148 = por %p146, %p147
      %p149 = scmp.ne.s32.totalorder %s135, %s136
      %p150 = scmp.eq.s32.totalorder %s23, 1
      %p151 = por %p149, %p150
      %p153 = scmp.ne.s32.totalorder %s136, %s152
      %p154 = scmp.eq.s32.totalorder %s23, 0
      %p155 = por %p153, %p154
      %p156 = scmp.le.s32.totalorder 1, %s17
      %p157 = scmp.lt.s32.totalorder %s17, 3
      %p158 = pnand %p156, %p157
      %p159 = pneg %p158
      // Predicated region
      $region9: #{tpu_custom_call.1} parent=5 // pred_check
        _
      $region10: #{tpu_custom_call.1} parent=5 // pred_check_branch
        %161 = sbr.rel (%p158) target = $region12
      $region11: #{tpu_custom_call.1} parent=5 // pred_region
        %s162 = ssub.s32 %s17, 1
        // Predicated region
        $region13: #{tpu_custom_call.1} parent=11 // pred_check
          %p163 = pneg %p78
        $region14: #{tpu_custom_call.1} parent=11 // pred_check_branch
          %165 = sbr.rel (%p163) target = $region16
        $region15: #{tpu_custom_call.1} parent=11 // pred_region
          %167 = vsyncadd [#allocation6], 0
          %s168 = sshll.u32 %s1, 4
          %s169 = int_to_ptr.hbm [resolvable:$true] %s168
          %s170 = sshll.u32 [#allocation5], 4
          %s171 = int_to_ptr.vmem [resolvable:$true] %s170
          %176 = dma.hbm_to_vmem [thread:$0]  %s169, 9216, %s171, [#allocation6], 64, 64, 4
        $region16: #{tpu_custom_call.1} parent=11 // pred_fallthru
          _
        // Predicated region
        $region17: #{tpu_custom_call.1} parent=11 // pred_check
          %p177 = pneg %p99
        $region18: #{tpu_custom_call.1} parent=11 // pred_check_branch
          %179 = sbr.rel (%p177) target = $region20
        $region19: #{tpu_custom_call.1} parent=11 // pred_region
          _
        $region20: #{tpu_custom_call.1} parent=11 // pred_fallthru
          _
        // Predicated region
        $region21: #{tpu_custom_call.1} parent=11 // pred_check
          %p180 = pneg %p120
        $region22: #{tpu_custom_call.1} parent=11 // pred_check_branch
          %182 = sbr.rel (%p180) target = $region24
        $region23: #{tpu_custom_call.1} parent=11 // pred_region
          _
        $region24: #{tpu_custom_call.1} parent=11 // pred_fallthru
          _
      $region12: #{tpu_custom_call.1} parent=5 // pred_fallthru
        _
      %p183 = scmp.lt.s32.totalorder %s17, 2
      // Predicated region
      $region25: #{tpu_custom_call.1} parent=5 // pred_check
        %p184 = pneg %p183
      $region26: #{tpu_custom_call.1} parent=5 // pred_check_branch
        %186 = sbr.rel (%p184) target = $region28
      $region27: #{tpu_custom_call.1} parent=5 // pred_region
        // Predicated region
        $region29: #{tpu_custom_call.1} parent=27 // pred_check
          %p187 = pneg %p51
        $region30: #{tpu_custom_call.1} parent=27 // pred_check_branch
          %189 = sbr.rel (%p187) target = $region32
        $region31: #{tpu_custom_call.1} parent=27 // pred_region
          %s190 = sand.u32 %s41, 1
          %s191 = scalar_lea.sflag [#allocation3], %s190
          %s192 = sand.u32 %s41, 1
          %s193 = smul.addr %s192, 288
          %s194 = scalar_lea.vmem [#allocation2], %s193
          %s195 = smul.u32 8, %s25
          %197 = vsyncadd %s191, 0
          %s198 = smul.addr %s195, 9
          %s199 = smul.addr %s24, 72
          %s200 = sadd.s32 %s198, %s199
          %s201 = smul.addr %s200, 4
          %s202 = scalar_lea.hbm %s0, %s201
          %s203 = sshll.u32 %s202, 4
          %s204 = int_to_ptr.hbm [resolvable:$true] %s203
          %s205 = sshll.u32 %s194, 4
          %s206 = int_to_ptr.vmem [resolvable:$true] %s205
          %211 = dma.hbm_to_vmem [thread:$0]  %s204, 4608, %s206, %s191, 576, 576, 36
        $region32: #{tpu_custom_call.1} parent=27 // pred_fallthru
          _
      $region28: #{tpu_custom_call.1} parent=5 // pred_fallthru
        _
      %p212 = scmp.le.s32.totalorder 1, %s17
      %p213 = scmp.lt.s32.totalorder %s17, 3
      %p214 = pnand %p212, %p213
      %p215 = pneg %p214
      // Predicated region
      $region33: #{tpu_custom_call.1} parent=5 // pred_check
        _
      $region34: #{tpu_custom_call.1} parent=5 // pred_check_branch
        %217 = sbr.rel (%p214) target = $region36
      $region35: #{tpu_custom_call.1} parent=5 // pred_region
        %s218 = ssub.s32 %s17, 1
        %s219 = sand.u32 %s44, 1
        %s220 = scalar_lea.sflag [#allocation3], %s219
        %s221 = sand.u32 %s44, 1
        %s222 = smul.addr %s221, 288
        %s223 = scalar_lea.vmem [#allocation2], %s222
        // Predicated region
        $region37: #{tpu_custom_call.1} parent=35 // pred_check
          %p224 = pneg %p57
        $region38: #{tpu_custom_call.1} parent=35 // pred_check_branch
          %226 = sbr.rel (%p224) target = $region40
        $region39: #{tpu_custom_call.1} parent=35 // pred_region
          %228 = dma.done %s220, 4608
        $region40: #{tpu_custom_call.1} parent=35 // pred_fallthru
          _
        // Predicated region
        $region41: #{tpu_custom_call.1} parent=35 // pred_check
          %p229 = pneg %p78
        $region42: #{tpu_custom_call.1} parent=35 // pred_check_branch
          %231 = sbr.rel (%p229) target = $region44
        $region43: #{tpu_custom_call.1} parent=35 // pred_region
          %233 = dma.done [#allocation6], 9216
        $region44: #{tpu_custom_call.1} parent=35 // pred_fallthru
          _
        %s234 = sand.u32 %s44, 1
        %s235 = scalar_lea.sflag [#allocation3], %s234
        %s236 = sand.u32 %s44, 1
        %s237 = smul.addr %s236, 288
        %s238 = scalar_lea.vmem [#allocation2], %s237
        %p239 = pneg %p57
        %p240 = pneg %p54
        %p241 = pneg %p78
        %p242 = pneg %p75
        %p243 = pneg %p99
        %p244 = pneg %p96
        %p245 = pneg %p120
        %p246 = pneg %p117
        %p247 = pneg %p148
        %p248 = pneg %p145
        %s249 = sand.u32 %s135, 1
        %s250 = scalar_lea.sflag [#allocation4], %s249
        %s251 = sand.u32 %s135, 1
        %s252 = smul.addr %s251, 32
        %s253 = scalar_lea.vmem [#allocation7], %s252
        %s254 = smul.u32 8, %s27
        %s255 = smul.u32 8, %s27
        %v256 = vld [vmem:[%s223] sm:$0xff]
        %v257 = vld [vmem:[%s223 + $0x8] sm:$0xff]
        %v258 = vld [vmem:[%s223 + $0x10] sm:$0xff]
        %v259 = vld [vmem:[%s223 + $0x18] sm:$0xff]
        %v260 = vld [vmem:[%s223 + $0x20] sm:$0xf]
        %v261 = vld [vmem:[%s223 + $0x24] sm:$0xff]
        %v262 = vld [vmem:[%s223 + $0x2c] sm:$0xff]
        %v263 = vld [vmem:[%s223 + $0x34] sm:$0xff]
        %v264 = vld [vmem:[%s223 + $0x3c] sm:$0xff]
        %v265 = vld [vmem:[%s223 + $0x44] sm:$0xf]
        %v266 = vld [vmem:[%s223 + $0x48] sm:$0xff]
        %v267 = vld [vmem:[%s223 + $0x50] sm:$0xff]
        %v268 = vld [vmem:[%s223 + $0x58] sm:$0xff]
        %v269 = vld [vmem:[%s223 + $0x60] sm:$0xff]
        %v270 = vld [vmem:[%s223 + $0x68] sm:$0xf]
        %v271 = vld [vmem:[%s223 + $0x6c] sm:$0xff]
        %v272 = vld [vmem:[%s223 + $0x74] sm:$0xff]
        %v273 = vld [vmem:[%s223 + $0x7c] sm:$0xff]
        %v274 = vld [vmem:[%s223 + $0x84] sm:$0xff]
        %v275 = vld [vmem:[%s223 + $0x8c] sm:$0xf]
        %v276 = vld [vmem:[%s223 + $0x90] sm:$0xff]
        %v277 = vld [vmem:[%s223 + $0x98] sm:$0xff]
        %v278 = vld [vmem:[%s223 + $0xa0] sm:$0xff]
        %v279 = vld [vmem:[%s223 + $0xa8] sm:$0xff]
        %v280 = vld [vmem:[%s223 + $0xb0] sm:$0xf]
        %v281 = vld [vmem:[%s223 + $0xb4] sm:$0xff]
        %v282 = vld [vmem:[%s223 + $0xbc] sm:$0xff]
        %v283 = vld [vmem:[%s223 + $0xc4] sm:$0xff]
        %v284 = vld [vmem:[%s223 + $0xcc] sm:$0xff]
        %v285 = vld [vmem:[%s223 + $0xd4] sm:$0xf]
        %v286 = vld [vmem:[%s223 + $0xd8] sm:$0xff]
        %v287 = vld [vmem:[%s223 + $0xe0] sm:$0xff]
        %v288 = vld [vmem:[%s223 + $0xe8] sm:$0xff]
        %v289 = vld [vmem:[%s223 + $0xf0] sm:$0xff]
        %v290 = vld [vmem:[%s223 + $0xf8] sm:$0xf]
        %v291 = vld [vmem:[%s223 + $0xfc] sm:$0xff]
        %v292 = vld [vmem:[%s223 + $0x104] sm:$0xff]
        %v293 = vld [vmem:[%s223 + $0x10c] sm:$0xff]
        %v294 = vld [vmem:[%s223 + $0x114] sm:$0xff]
        %v295 = vld [vmem:[%s223 + $0x11c] sm:$0xf]
        %v296 = vld [vmem:[#allocation5] sm:$0xf]
        %v297 = vld [vmem:[#allocation5 + $0x4] sm:$0xf]
        %v298 = vld [vmem:[#allocation5 + $0x8] sm:$0xf]
        %v299 = vld [vmem:[#allocation5 + $0xc] sm:$0xf]
        %v300 = vld [vmem:[#allocation5 + $0x10] sm:$0xf]
        %v301 = vld [vmem:[#allocation5 + $0x14] sm:$0xf]
        %v302 = vld [vmem:[#allocation5 + $0x18] sm:$0xf]
        %v303 = vld [vmem:[#allocation5 + $0x1c] sm:$0xf]
        %v304 = vld [vmem:[#allocation5 + $0x20] sm:$0xf]
        %v305 = vld [vmem:[#allocation5 + $0x24] sm:$0xf]
        %v306 = vld [vmem:[#allocation5 + $0x28] sm:$0xf]
        %v307 = vld [vmem:[#allocation5 + $0x2c] sm:$0xf]
        %v308 = vld [vmem:[#allocation5 + $0x30] sm:$0xf]
        %v309 = vld [vmem:[#allocation5 + $0x34] sm:$0xf]
        %v310 = vld [vmem:[#allocation5 + $0x38] sm:$0xf]
        %v311 = vld [vmem:[#allocation5 + $0x3c] sm:$0xf]
        %v312 = vld [vmem:[#allocation5 + $0x40] sm:$0xf]
        %v313 = vld [vmem:[#allocation5 + $0x44] sm:$0xf]
        %v314 = vld [vmem:[#allocation5 + $0x48] sm:$0xf]
        %v315 = vld [vmem:[#allocation5 + $0x4c] sm:$0xf]
        %v316 = vld [vmem:[#allocation5 + $0x50] sm:$0xf]
        %v317 = vld [vmem:[#allocation5 + $0x54] sm:$0xf]
        %v318 = vld [vmem:[#allocation5 + $0x58] sm:$0xf]
        %v319 = vld [vmem:[#allocation5 + $0x5c] sm:$0xf]
        %v320 = vld [vmem:[#allocation5 + $0x60] sm:$0xf]
        %v321 = vld [vmem:[#allocation5 + $0x64] sm:$0xf]
        %v322 = vld [vmem:[#allocation5 + $0x68] sm:$0xf]
        %v323 = vld [vmem:[#allocation5 + $0x6c] sm:$0xf]
        %v324 = vld [vmem:[#allocation5 + $0x70] sm:$0xf]
        %v325 = vld [vmem:[#allocation5 + $0x74] sm:$0xf]
        %v326 = vld [vmem:[#allocation5 + $0x78] sm:$0xf]
        %v327 = vld [vmem:[#allocation5 + $0x7c] sm:$0xf]
        %v328 = vld [vmem:[#allocation5 + $0x80] sm:$0xf]
        %v329 = vld [vmem:[#allocation5 + $0x84] sm:$0xf]
        %v330 = vld [vmem:[#allocation5 + $0x88] sm:$0xf]
        %v331 = vld [vmem:[#allocation5 + $0x8c] sm:$0xf]
        %v332 = vld [vmem:[#allocation5 + $0x90] sm:$0xf]
        %v333 = vld [vmem:[#allocation5 + $0x94] sm:$0xf]
        %v334 = vld [vmem:[#allocation5 + $0x98] sm:$0xf]
        %v335 = vld [vmem:[#allocation5 + $0x9c] sm:$0xf]
        %v336 = vld [vmem:[#allocation5 + $0xa0] sm:$0xf]
        %v337 = vld [vmem:[#allocation5 + $0xa4] sm:$0xf]
        %v338 = vld [vmem:[#allocation5 + $0xa8] sm:$0xf]
        %v339 = vld [vmem:[#allocation5 + $0xac] sm:$0xf]
        %v340 = vld [vmem:[#allocation5 + $0xb0] sm:$0xf]
        %v341 = vld [vmem:[#allocation5 + $0xb4] sm:$0xf]
        %v342 = vld [vmem:[#allocation5 + $0xb8] sm:$0xf]
        %v343 = vld [vmem:[#allocation5 + $0xbc] sm:$0xf]
        %v344 = vld [vmem:[#allocation5 + $0xc0] sm:$0xf]
        %v345 = vld [vmem:[#allocation5 + $0xc4] sm:$0xf]
        %v346 = vld [vmem:[#allocation5 + $0xc8] sm:$0xf]
        %v347 = vld [vmem:[#allocation5 + $0xcc] sm:$0xf]
        %v348 = vld [vmem:[#allocation5 + $0xd0] sm:$0xf]
        %v349 = vld [vmem:[#allocation5 + $0xd4] sm:$0xf]
        %v350 = vld [vmem:[#allocation5 + $0xd8] sm:$0xf]
        %v351 = vld [vmem:[#allocation5 + $0xdc] sm:$0xf]
        %v352 = vld [vmem:[#allocation5 + $0xe0] sm:$0xf]
        %v353 = vld [vmem:[#allocation5 + $0xe4] sm:$0xf]
        %v354 = vld [vmem:[#allocation5 + $0xe8] sm:$0xf]
        %v355 = vld [vmem:[#allocation5 + $0xec] sm:$0xf]
        %v356 = vld [vmem:[#allocation5 + $0xf0] sm:$0xf]
        %v357 = vld [vmem:[#allocation5 + $0xf4] sm:$0xf]
        %v358 = vld [vmem:[#allocation5 + $0xf8] sm:$0xf]
        %v359 = vld [vmem:[#allocation5 + $0xfc] sm:$0xf]
        %v360 = vld [vmem:[#allocation5 + $0x100] sm:$0xf]
        %v361 = vld [vmem:[#allocation5 + $0x104] sm:$0xf]
        %v362 = vld [vmem:[#allocation5 + $0x108] sm:$0xf]
        %v363 = vld [vmem:[#allocation5 + $0x10c] sm:$0xf]
        %v364 = vld [vmem:[#allocation5 + $0x110] sm:$0xf]
        %v365 = vld [vmem:[#allocation5 + $0x114] sm:$0xf]
        %v366 = vld [vmem:[#allocation5 + $0x118] sm:$0xf]
        %v367 = vld [vmem:[#allocation5 + $0x11c] sm:$0xf]
        %v368 = vld [vmem:[#allocation5 + $0x120] sm:$0xf]
        %v369 = vld [vmem:[#allocation5 + $0x124] sm:$0xf]
        %v370 = vld [vmem:[#allocation5 + $0x128] sm:$0xf]
        %v371 = vld [vmem:[#allocation5 + $0x12c] sm:$0xf]
        %v372 = vld [vmem:[#allocation5 + $0x130] sm:$0xf]
        %v373 = vld [vmem:[#allocation5 + $0x134] sm:$0xf]
        %v374 = vld [vmem:[#allocation5 + $0x138] sm:$0xf]
        %v375 = vld [vmem:[#allocation5 + $0x13c] sm:$0xf]
        %v376 = vld [vmem:[#allocation5 + $0x140] sm:$0xf]
        %v377 = vld [vmem:[#allocation5 + $0x144] sm:$0xf]
        %v378 = vld [vmem:[#allocation5 + $0x148] sm:$0xf]
        %v379 = vld [vmem:[#allocation5 + $0x14c] sm:$0xf]
        %v380 = vld [vmem:[#allocation5 + $0x150] sm:$0xf]
        %v381 = vld [vmem:[#allocation5 + $0x154] sm:$0xf]
        %v382 = vld [vmem:[#allocation5 + $0x158] sm:$0xf]
        %v383 = vld [vmem:[#allocation5 + $0x15c] sm:$0xf]
        %v384 = vld [vmem:[#allocation5 + $0x160] sm:$0xf]
        %v385 = vld [vmem:[#allocation5 + $0x164] sm:$0xf]
        %v386 = vld [vmem:[#allocation5 + $0x168] sm:$0xf]
        %v387 = vld [vmem:[#allocation5 + $0x16c] sm:$0xf]
        %v388 = vld [vmem:[#allocation5 + $0x170] sm:$0xf]
        %v389 = vld [vmem:[#allocation5 + $0x174] sm:$0xf]
        %v390 = vld [vmem:[#allocation5 + $0x178] sm:$0xf]
        %v391 = vld [vmem:[#allocation5 + $0x17c] sm:$0xf]
        %v392 = vld [vmem:[#allocation5 + $0x180] sm:$0xf]
        %v393 = vld [vmem:[#allocation5 + $0x184] sm:$0xf]
        %v394 = vld [vmem:[#allocation5 + $0x188] sm:$0xf]
        %v395 = vld [vmem:[#allocation5 + $0x18c] sm:$0xf]
        %v396 = vld [vmem:[#allocation5 + $0x190] sm:$0xf]
        %v397 = vld [vmem:[#allocation5 + $0x194] sm:$0xf]
        %v398 = vld [vmem:[#allocation5 + $0x198] sm:$0xf]
        %v399 = vld [vmem:[#allocation5 + $0x19c] sm:$0xf]
        %v400 = vld [vmem:[#allocation5 + $0x1a0] sm:$0xf]
        %v401 = vld [vmem:[#allocation5 + $0x1a4] sm:$0xf]
        %v402 = vld [vmem:[#allocation5 + $0x1a8] sm:$0xf]
        %v403 = vld [vmem:[#allocation5 + $0x1ac] sm:$0xf]
        %v404 = vld [vmem:[#allocation5 + $0x1b0] sm:$0xf]
        %v405 = vld [vmem:[#allocation5 + $0x1b4] sm:$0xf]
        %v406 = vld [vmem:[#allocation5 + $0x1b8] sm:$0xf]
        %v407 = vld [vmem:[#allocation5 + $0x1bc] sm:$0xf]
        %v408 = vld [vmem:[#allocation5 + $0x1c0] sm:$0xf]
        %v409 = vld [vmem:[#allocation5 + $0x1c4] sm:$0xf]
        %v410 = vld [vmem:[#allocation5 + $0x1c8] sm:$0xf]
        %v411 = vld [vmem:[#allocation5 + $0x1cc] sm:$0xf]
        %v412 = vld [vmem:[#allocation5 + $0x1d0] sm:$0xf]
        %v413 = vld [vmem:[#allocation5 + $0x1d4] sm:$0xf]
        %v414 = vld [vmem:[#allocation5 + $0x1d8] sm:$0xf]
        %v415 = vld [vmem:[#allocation5 + $0x1dc] sm:$0xf]
        %v416 = vld [vmem:[#allocation5 + $0x1e0] sm:$0xf]
        %v417 = vld [vmem:[#allocation5 + $0x1e4] sm:$0xf]
        %v418 = vld [vmem:[#allocation5 + $0x1e8] sm:$0xf]
        %v419 = vld [vmem:[#allocation5 + $0x1ec] sm:$0xf]
        %v420 = vld [vmem:[#allocation5 + $0x1f0] sm:$0xf]
        %v421 = vld [vmem:[#allocation5 + $0x1f4] sm:$0xf]
        %v422 = vld [vmem:[#allocation5 + $0x1f8] sm:$0xf]
        %v423 = vld [vmem:[#allocation5 + $0x1fc] sm:$0xf]
        %v424 = vld [vmem:[#allocation5 + $0x200] sm:$0xf]
        %v425 = vld [vmem:[#allocation5 + $0x204] sm:$0xf]
        %v426 = vld [vmem:[#allocation5 + $0x208] sm:$0xf]
        %v427 = vld [vmem:[#allocation5 + $0x20c] sm:$0xf]
        %v428 = vld [vmem:[#allocation5 + $0x210] sm:$0xf]
        %v429 = vld [vmem:[#allocation5 + $0x214] sm:$0xf]
        %v430 = vld [vmem:[#allocation5 + $0x218] sm:$0xf]
        %v431 = vld [vmem:[#allocation5 + $0x21c] sm:$0xf]
        %v432 = vld [vmem:[#allocation5 + $0x220] sm:$0xf]
        %v433 = vld [vmem:[#allocation5 + $0x224] sm:$0xf]
        %v434 = vld [vmem:[#allocation5 + $0x228] sm:$0xf]
        %v435 = vld [vmem:[#allocation5 + $0x22c] sm:$0xf]
        %v436 = vld [vmem:[#allocation5 + $0x230] sm:$0xf]
        %v437 = vld [vmem:[#allocation5 + $0x234] sm:$0xf]
        %v438 = vld [vmem:[#allocation5 + $0x238] sm:$0xf]
        %v439 = vld [vmem:[#allocation5 + $0x23c] sm:$0xf]
        %v480 = vunpack.c.l.b16 %v256
        %v481 = vunpack.c.h.b16 %v256
        %v482 = vunpack.c.l.b16 %v257
        %v483 = vunpack.c.h.b16 %v257
        %v484 = vunpack.c.l.b16 %v258
        %v485 = vunpack.c.h.b16 %v258
        %v486 = vunpack.c.l.b16 %v259
        %v487 = vunpack.c.h.b16 %v259
        %v488 = vunpack.c.l.b16 %v260
        %v489 = vunpack.c.l.b16 %v261
        %v490 = vunpack.c.h.b16 %v261
        %v491 = vunpack.c.l.b16 %v262
        %v492 = vunpack.c.h.b16 %v262
        %v493 = vunpack.c.l.b16 %v263
        %v494 = vunpack.c.h.b16 %v263
        %v495 = vunpack.c.l.b16 %v264
        %v496 = vunpack.c.h.b16 %v264
        %v497 = vunpack.c.l.b16 %v265
        %v498 = vunpack.c.l.b16 %v266
        %v499 = vunpack.c.h.b16 %v266
        %v500 = vunpack.c.l.b16 %v267
        %v501 = vunpack.c.h.b16 %v267
        %v502 = vunpack.c.l.b16 %v268
        %v503 = vunpack.c.h.b16 %v268
        %v504 = vunpack.c.l.b16 %v269
        %v505 = vunpack.c.h.b16 %v269
        %v506 = vunpack.c.l.b16 %v270
        %v507 = vunpack.c.l.b16 %v271
        %v508 = vunpack.c.h.b16 %v271
        %v509 = vunpack.c.l.b16 %v272
        %v510 = vunpack.c.h.b16 %v272
        %v511 = vunpack.c.l.b16 %v273
        %v512 = vunpack.c.h.b16 %v273
        %v513 = vunpack.c.l.b16 %v274
        %v514 = vunpack.c.h.b16 %v274
        %v515 = vunpack.c.l.b16 %v275
        %v516 = vunpack.c.l.b16 %v276
        %v517 = vunpack.c.h.b16 %v276
        %v518 = vunpack.c.l.b16 %v277
        %v519 = vunpack.c.h.b16 %v277
        %v520 = vunpack.c.l.b16 %v278
        %v521 = vunpack.c.h.b16 %v278
        %v522 = vunpack.c.l.b16 %v279
        %v523 = vunpack.c.h.b16 %v279
        %v524 = vunpack.c.l.b16 %v280
        %v525 = vunpack.c.l.b16 %v281
        %v526 = vunpack.c.h.b16 %v281
        %v527 = vunpack.c.l.b16 %v282
        %v528 = vunpack.c.h.b16 %v282
        %v529 = vunpack.c.l.b16 %v283
        %v530 = vunpack.c.h.b16 %v283
        %v531 = vunpack.c.l.b16 %v284
        %v532 = vunpack.c.h.b16 %v284
        %v533 = vunpack.c.l.b16 %v285
        %v534 = vunpack.c.l.b16 %v286
        %v535 = vunpack.c.h.b16 %v286
        %v536 = vunpack.c.l.b16 %v287
        %v537 = vunpack.c.h.b16 %v287
        %v538 = vunpack.c.l.b16 %v288
        %v539 = vunpack.c.h.b16 %v288
        %v540 = vunpack.c.l.b16 %v289
        %v541 = vunpack.c.h.b16 %v289
        %v542 = vunpack.c.l.b16 %v290
        %v543 = vunpack.c.l.b16 %v291
        %v544 = vunpack.c.h.b16 %v291
        %v545 = vunpack.c.l.b16 %v292
        %v546 = vunpack.c.h.b16 %v292
        %v547 = vunpack.c.l.b16 %v293
        %v548 = vunpack.c.h.b16 %v293
        %v549 = vunpack.c.l.b16 %v294
        %v550 = vunpack.c.h.b16 %v294
        %v551 = vunpack.c.l.b16 %v295
        %v552 = vpack.c.b16 %v489, %v480
        %v553 = vpack.c.b16 %v490, %v481
        %v554 = vpack.c.b16 %v491, %v482
        %v555 = vpack.c.b16 %v492, %v483
        %v556 = vpack.c.b16 %v493, %v484
        %v557 = vpack.c.b16 %v494, %v485
        %v558 = vpack.c.b16 %v495, %v486
        %v559 = vpack.c.b16 %v496, %v487
        %v560 = vpack.c.b16 %v497, %v488
        %v561 = vpack.c.b16 %v507, %v498
        %v562 = vpack.c.b16 %v508, %v499
        %v563 = vpack.c.b16 %v509, %v500
        %v564 = vpack.c.b16 %v510, %v501
        %v565 = vpack.c.b16 %v511, %v502
        %v566 = vpack.c.b16 %v512, %v503
        %v567 = vpack.c.b16 %v513, %v504
        %v568 = vpack.c.b16 %v514, %v505
        %v569 = vpack.c.b16 %v515, %v506
        %v570 = vpack.c.b16 %v525, %v516
        %v571 = vpack.c.b16 %v526, %v517
        %v572 = vpack.c.b16 %v527, %v518
        %v573 = vpack.c.b16 %v528, %v519
        %v574 = vpack.c.b16 %v529, %v520
        %v575 = vpack.c.b16 %v530, %v521
        %v576 = vpack.c.b16 %v531, %v522
        %v577 = vpack.c.b16 %v532, %v523
        %v578 = vpack.c.b16 %v533, %v524
        %v579 = vpack.c.b16 %v543, %v534
        %v580 = vpack.c.b16 %v544, %v535
        %v581 = vpack.c.b16 %v545, %v536
        %v582 = vpack.c.b16 %v546, %v537
        %v583 = vpack.c.b16 %v547, %v538
        %v584 = vpack.c.b16 %v548, %v539
        %v585 = vpack.c.b16 %v549, %v540
        %v586 = vpack.c.b16 %v550, %v541
        %v587 = vpack.c.b16 %v551, %v542
        %v768 = vunpack.c.l.b16 %v296
        %v769 = vunpack.c.l.b16 %v297
        %v770 = vunpack.c.l.b16 %v298
        %v771 = vunpack.c.l.b16 %v299
        %v772 = vunpack.c.l.b16 %v300
        %v773 = vunpack.c.l.b16 %v301
        %v774 = vunpack.c.l.b16 %v302
        %v775 = vunpack.c.l.b16 %v303
        %v776 = vunpack.c.l.b16 %v304
        %v777 = vunpack.c.l.b16 %v305
        %v778 = vunpack.c.l.b16 %v306
        %v779 = vunpack.c.l.b16 %v307
        %v780 = vunpack.c.l.b16 %v308
        %v781 = vunpack.c.l.b16 %v309
        %v782 = vunpack.c.l.b16 %v310
        %v783 = vunpack.c.l.b16 %v311
        %v784 = vunpack.c.l.b16 %v312
        %v785 = vunpack.c.l.b16 %v313
        %v786 = vunpack.c.l.b16 %v314
        %v787 = vunpack.c.l.b16 %v315
        %v788 = vunpack.c.l.b16 %v316
        %v789 = vunpack.c.l.b16 %v317
        %v790 = vunpack.c.l.b16 %v318
        %v791 = vunpack.c.l.b16 %v319
        %v792 = vunpack.c.l.b16 %v320
        %v793 = vunpack.c.l.b16 %v321
        %v794 = vunpack.c.l.b16 %v322
        %v795 = vunpack.c.l.b16 %v323
        %v796 = vunpack.c.l.b16 %v324
        %v797 = vunpack.c.l.b16 %v325
        %v798 = vunpack.c.l.b16 %v326
        %v799 = vunpack.c.l.b16 %v327
        %v800 = vunpack.c.l.b16 %v328
        %v801 = vunpack.c.l.b16 %v329
        %v802 = vunpack.c.l.b16 %v330
        %v803 = vunpack.c.l.b16 %v331
        %v804 = vunpack.c.l.b16 %v332
        %v805 = vunpack.c.l.b16 %v333
        %v806 = vunpack.c.l.b16 %v334
        %v807 = vunpack.c.l.b16 %v335
        %v808 = vunpack.c.l.b16 %v336
        %v809 = vunpack.c.l.b16 %v337
        %v810 = vunpack.c.l.b16 %v338
        %v811 = vunpack.c.l.b16 %v339
        %v812 = vunpack.c.l.b16 %v340
        %v813 = vunpack.c.l.b16 %v341
        %v814 = vunpack.c.l.b16 %v342
        %v815 = vunpack.c.l.b16 %v343
        %v816 = vunpack.c.l.b16 %v344
        %v817 = vunpack.c.l.b16 %v345
        %v818 = vunpack.c.l.b16 %v346
        %v819 = vunpack.c.l.b16 %v347
        %v820 = vunpack.c.l.b16 %v348
        %v821 = vunpack.c.l.b16 %v349
        %v822 = vunpack.c.l.b16 %v350
        %v823 = vunpack.c.l.b16 %v351
        %v824 = vunpack.c.l.b16 %v352
        %v825 = vunpack.c.l.b16 %v353
        %v826 = vunpack.c.l.b16 %v354
        %v827 = vunpack.c.l.b16 %v355
        %v828 = vunpack.c.l.b16 %v356
        %v829 = vunpack.c.l.b16 %v357
        %v830 = vunpack.c.l.b16 %v358
        %v831 = vunpack.c.l.b16 %v359
        %v832 = vunpack.c.l.b16 %v360
        %v833 = vunpack.c.l.b16 %v361
        %v834 = vunpack.c.l.b16 %v362
        %v835 = vunpack.c.l.b16 %v363
        %v836 = vunpack.c.l.b16 %v364
        %v837 = vunpack.c.l.b16 %v365
        %v838 = vunpack.c.l.b16 %v366
        %v839 = vunpack.c.l.b16 %v367
        %v840 = vunpack.c.l.b16 %v368
        %v841 = vunpack.c.l.b16 %v369
        %v842 = vunpack.c.l.b16 %v370
        %v843 = vunpack.c.l.b16 %v371
        %v844 = vunpack.c.l.b16 %v372
        %v845 = vunpack.c.l.b16 %v373
        %v846 = vunpack.c.l.b16 %v374
        %v847 = vunpack.c.l.b16 %v375
        %v848 = vunpack.c.l.b16 %v376
        %v849 = vunpack.c.l.b16 %v377
        %v850 = vunpack.c.l.b16 %v378
        %v851 = vunpack.c.l.b16 %v379
        %v852 = vunpack.c.l.b16 %v380
        %v853 = vunpack.c.l.b16 %v381
        %v854 = vunpack.c.l.b16 %v382
        %v855 = vunpack.c.l.b16 %v383
        %v856 = vunpack.c.l.b16 %v384
        %v857 = vunpack.c.l.b16 %v385
        %v858 = vunpack.c.l.b16 %v386
        %v859 = vunpack.c.l.b16 %v387
        %v860 = vunpack.c.l.b16 %v388
        %v861 = vunpack.c.l.b16 %v389
        %v862 = vunpack.c.l.b16 %v390
        %v863 = vunpack.c.l.b16 %v391
        %v864 = vunpack.c.l.b16 %v392
        %v865 = vunpack.c.l.b16 %v393
        %v866 = vunpack.c.l.b16 %v394
        %v867 = vunpack.c.l.b16 %v395
        %v868 = vunpack.c.l.b16 %v396
        %v869 = vunpack.c.l.b16 %v397
        %v870 = vunpack.c.l.b16 %v398
        %v871 = vunpack.c.l.b16 %v399
        %v872 = vunpack.c.l.b16 %v400
        %v873 = vunpack.c.l.b16 %v401
        %v874 = vunpack.c.l.b16 %v402
        %v875 = vunpack.c.l.b16 %v403
        %v876 = vunpack.c.l.b16 %v404
        %v877 = vunpack.c.l.b16 %v405
        %v878 = vunpack.c.l.b16 %v406
        %v879 = vunpack.c.l.b16 %v407
        %v880 = vunpack.c.l.b16 %v408
        %v881 = vunpack.c.l.b16 %v409
        %v882 = vunpack.c.l.b16 %v410
        %v883 = vunpack.c.l.b16 %v411
        %v884 = vunpack.c.l.b16 %v412
        %v885 = vunpack.c.l.b16 %v413
        %v886 = vunpack.c.l.b16 %v414
        %v887 = vunpack.c.l.b16 %v415
        %v888 = vunpack.c.l.b16 %v416
        %v889 = vunpack.c.l.b16 %v417
        %v890 = vunpack.c.l.b16 %v418
        %v891 = vunpack.c.l.b16 %v419
        %v892 = vunpack.c.l.b16 %v420
        %v893 = vunpack.c.l.b16 %v421
        %v894 = vunpack.c.l.b16 %v422
        %v895 = vunpack.c.l.b16 %v423
        %v896 = vunpack.c.l.b16 %v424
        %v897 = vunpack.c.l.b16 %v425
        %v898 = vunpack.c.l.b16 %v426
        %v899 = vunpack.c.l.b16 %v427
        %v900 = vunpack.c.l.b16 %v428
        %v901 = vunpack.c.l.b16 %v429
        %v902 = vunpack.c.l.b16 %v430
        %v903 = vunpack.c.l.b16 %v431
        %v904 = vunpack.c.l.b16 %v432
        %v905 = vunpack.c.l.b16 %v433
        %v906 = vunpack.c.l.b16 %v434
        %v907 = vunpack.c.l.b16 %v435
        %v908 = vunpack.c.l.b16 %v436
        %v909 = vunpack.c.l.b16 %v437
        %v910 = vunpack.c.l.b16 %v438
        %v911 = vunpack.c.l.b16 %v439
        %v912 = vpack.c.b16 %v769, %v768
        %v913 = vpack.c.b16 %v771, %v770
        %v914 = vpack.c.b16 %v773, %v772
        %v915 = vpack.c.b16 %v775, %v774
        %v916 = vpack.c.b16 %v777, %v776
        %v917 = vpack.c.b16 %v779, %v778
        %v918 = vpack.c.b16 %v781, %v780
        %v919 = vpack.c.b16 %v783, %v782
        %v920 = vpack.c.b16 %v785, %v784
        %v921 = vpack.c.b16 %v787, %v786
        %v922 = vpack.c.b16 %v789, %v788
        %v923 = vpack.c.b16 %v791, %v790
        %v924 = vpack.c.b16 %v793, %v792
        %v925 = vpack.c.b16 %v795, %v794
        %v926 = vpack.c.b16 %v797, %v796
        %v927 = vpack.c.b16 %v799, %v798
        %v928 = vpack.c.b16 %v801, %v800
        %v929 = vpack.c.b16 %v803, %v802
        %v930 = vpack.c.b16 %v805, %v804
        %v931 = vpack.c.b16 %v807, %v806
        %v932 = vpack.c.b16 %v809, %v808
        %v933 = vpack.c.b16 %v811, %v810
        %v934 = vpack.c.b16 %v813, %v812
        %v935 = vpack.c.b16 %v815, %v814
        %v936 = vpack.c.b16 %v817, %v816
        %v937 = vpack.c.b16 %v819, %v818
        %v938 = vpack.c.b16 %v821, %v820
        %v939 = vpack.c.b16 %v823, %v822
        %v940 = vpack.c.b16 %v825, %v824
        %v941 = vpack.c.b16 %v827, %v826
        %v942 = vpack.c.b16 %v829, %v828
        %v943 = vpack.c.b16 %v831, %v830
        %v944 = vpack.c.b16 %v833, %v832
        %v945 = vpack.c.b16 %v835, %v834
        %v946 = vpack.c.b16 %v837, %v836
        %v947 = vpack.c.b16 %v839, %v838
        %v948 = vpack.c.b16 %v841, %v840
        %v949 = vpack.c.b16 %v843, %v842
        %v950 = vpack.c.b16 %v845, %v844
        %v951 = vpack.c.b16 %v847, %v846
        %v952 = vpack.c.b16 %v849, %v848
        %v953 = vpack.c.b16 %v851, %v850
        %v954 = vpack.c.b16 %v853, %v852
        %v955 = vpack.c.b16 %v855, %v854
        %v956 = vpack.c.b16 %v857, %v856
        %v957 = vpack.c.b16 %v859, %v858
        %v958 = vpack.c.b16 %v861, %v860
        %v959 = vpack.c.b16 %v863, %v862
        %v960 = vpack.c.b16 %v865, %v864
        %v961 = vpack.c.b16 %v867, %v866
        %v962 = vpack.c.b16 %v869, %v868
        %v963 = vpack.c.b16 %v871, %v870
        %v964 = vpack.c.b16 %v873, %v872
        %v965 = vpack.c.b16 %v875, %v874
        %v966 = vpack.c.b16 %v877, %v876
        %v967 = vpack.c.b16 %v879, %v878
        %v968 = vpack.c.b16 %v881, %v880
        %v969 = vpack.c.b16 %v883, %v882
        %v970 = vpack.c.b16 %v885, %v884
        %v971 = vpack.c.b16 %v887, %v886
        %v972 = vpack.c.b16 %v889, %v888
        %v973 = vpack.c.b16 %v891, %v890
        %v974 = vpack.c.b16 %v893, %v892
        %v975 = vpack.c.b16 %v895, %v894
        %v976 = vpack.c.b16 %v897, %v896
        %v977 = vpack.c.b16 %v899, %v898
        %v978 = vpack.c.b16 %v901, %v900
        %v979 = vpack.c.b16 %v903, %v902
        %v980 = vpack.c.b16 %v905, %v904
        %v981 = vpack.c.b16 %v907, %v906
        %v982 = vpack.c.b16 %v909, %v908
        %v983 = vpack.c.b16 %v911, %v910
        %1056 = vmatpush.bf16.msra.mxu0 %v919
        %1057 = vmatpush.bf16.msra.mxu0 %v918
        %1058 = vmatpush.bf16.msra.mxu0 %v917
        %1059 = vmatpush.bf16.msra.mxu0 %v916
        %1060 = vmatpush.bf16.msra.mxu0 %v915
        %1061 = vmatpush.bf16.msra.mxu0 %v914
        %1062 = vmatpush.bf16.msra.mxu0 %v913
        %1063 = vmatpush.bf16.msra.mxu0 %v912
        %1064 = vmatmul.bf16.gmra.mxu0 %v552
        %v1065 = vpop.f32.mrf.mxu0
        %v1066 = vadd.f32 0.0, %v1065
        %v1067 = vpop.f32.mrf.mxu0
        %v1068 = vadd.f32 0.0, %v1067
        %1069 = vmatmul.bf16.gmra.mxu0 %v561
        %v1070 = vpop.f32.mrf.mxu0
        %v1071 = vadd.f32 0.0, %v1070
        %v1072 = vpop.f32.mrf.mxu0
        %v1073 = vadd.f32 0.0, %v1072
        %1074 = vmatmul.bf16.gmra.mxu0 %v570
        %v1075 = vpop.f32.mrf.mxu0
        %v1076 = vadd.f32 0.0, %v1075
        %v1077 = vpop.f32.mrf.mxu0
        %v1078 = vadd.f32 0.0, %v1077
        %1079 = vmatmul.bf16.gmra.mxu0 %v579
        %v1080 = vpop.f32.mrf.mxu0
        %v1081 = vadd.f32 0.0, %v1080
        %v1082 = vpop.f32.mrf.mxu0
        %v1083 = vadd.f32 0.0, %v1082
        %1084 = vdwg.mxu0
        %1085 = vmatpush.bf16.msra.mxu0 %v927
        %1086 = vmatpush.bf16.msra.mxu0 %v926
        %1087 = vmatpush.bf16.msra.mxu0 %v925
        %1088 = vmatpush.bf16.msra.mxu0 %v924
        %1089 = vmatpush.bf16.msra.mxu0 %v923
        %1090 = vmatpush.bf16.msra.mxu0 %v922
        %1091 = vmatpush.bf16.msra.mxu0 %v921
        %1092 = vmatpush.bf16.msra.mxu0 %v920
        %1093 = vmatmul.bf16.gmra.mxu0 %v553
        %v1094 = vpop.f32.mrf.mxu0
        %v1095 = vadd.f32 %v1066, %v1094
        %v1096 = vpop.f32.mrf.mxu0
        %v1097 = vadd.f32 %v1068, %v1096
        %1098 = vmatmul.bf16.gmra.mxu0 %v562
        %v1099 = vpop.f32.mrf.mxu0
        %v1100 = vadd.f32 %v1071, %v1099
        %v1101 = vpop.f32.mrf.mxu0
        %v1102 = vadd.f32 %v1073, %v1101
        %1103 = vmatmul.bf16.gmra.mxu0 %v571
        %v1104 = vpop.f32.mrf.mxu0
        %v1105 = vadd.f32 %v1076, %v1104
        %v1106 = vpop.f32.mrf.mxu0
        %v1107 = vadd.f32 %v1078, %v1106
        %1108 = vmatmul.bf16.gmra.mxu0 %v580
        %v1109 = vpop.f32.mrf.mxu0
        %v1110 = vadd.f32 %v1081, %v1109
        %v1111 = vpop.f32.mrf.mxu0
        %v1112 = vadd.f32 %v1083, %v1111
        %1113 = vdwg.mxu0
        %1114 = vmatpush.bf16.msra.mxu0 %v935
        %1115 = vmatpush.bf16.msra.mxu0 %v934
        %1116 = vmatpush.bf16.msra.mxu0 %v933
        %1117 = vmatpush.bf16.msra.mxu0 %v932
        %1118 = vmatpush.bf16.msra.mxu0 %v931
        %1119 = vmatpush.bf16.msra.mxu0 %v930
        %1120 = vmatpush.bf16.msra.mxu0 %v929
        %1121 = vmatpush.bf16.msra.mxu0 %v928
        %1122 = vmatmul.bf16.gmra.mxu0 %v554
        %v1123 = vpop.f32.mrf.mxu0
        %v1124 = vadd.f32 %v1095, %v1123
        %v1125 = vpop.f32.mrf.mxu0
        %v1126 = vadd.f32 %v1097, %v1125
        %1127 = vmatmul.bf16.gmra.mxu0 %v563
        %v1128 = vpop.f32.mrf.mxu0
        %v1129 = vadd.f32 %v1100, %v1128
        %v1130 = vpop.f32.mrf.mxu0
        %v1131 = vadd.f32 %v1102, %v1130
        %1132 = vmatmul.bf16.gmra.mxu0 %v572
        %v1133 = vpop.f32.mrf.mxu0
        %v1134 = vadd.f32 %v1105, %v1133
        %v1135 = vpop.f32.mrf.mxu0
        %v1136 = vadd.f32 %v1107, %v1135
        %1137 = vmatmul.bf16.gmra.mxu0 %v581
        %v1138 = vpop.f32.mrf.mxu0
        %v1139 = vadd.f32 %v1110, %v1138
        %v1140 = vpop.f32.mrf.mxu0
        %v1141 = vadd.f32 %v1112, %v1140
        %1142 = vdwg.mxu0
        %1143 = vmatpush.bf16.msra.mxu0 %v943
        %1144 = vmatpush.bf16.msra.mxu0 %v942
        %1145 = vmatpush.bf16.msra.mxu0 %v941
        %1146 = vmatpush.bf16.msra.mxu0 %v940
        %1147 = vmatpush.bf16.msra.mxu0 %v939
        %1148 = vmatpush.bf16.msra.mxu0 %v938
        %1149 = vmatpush.bf16.msra.mxu0 %v937
        %1150 = vmatpush.bf16.msra.mxu0 %v936
        %1151 = vmatmul.bf16.gmra.mxu0 %v555
        %v1152 = vpop.f32.mrf.mxu0
        %v1153 = vadd.f32 %v1124, %v1152
        %v1154 = vpop.f32.mrf.mxu0
        %v1155 = vadd.f32 %v1126, %v1154
        %1156 = vmatmul.bf16.gmra.mxu0 %v564
        %v1157 = vpop.f32.mrf.mxu0
        %v1158 = vadd.f32 %v1129, %v1157
        %v1159 = vpop.f32.mrf.mxu0
        %v1160 = vadd.f32 %v1131, %v1159
        %1161 = vmatmul.bf16.gmra.mxu0 %v573
        %v1162 = vpop.f32.mrf.mxu0
        %v1163 = vadd.f32 %v1134, %v1162
        %v1164 = vpop.f32.mrf.mxu0
        %v1165 = vadd.f32 %v1136, %v1164
        %1166 = vmatmul.bf16.gmra.mxu0 %v582
        %v1167 = vpop.f32.mrf.mxu0
        %v1168 = vadd.f32 %v1139, %v1167
        %v1169 = vpop.f32.mrf.mxu0
        %v1170 = vadd.f32 %v1141, %v1169
        %1171 = vdwg.mxu0
        %1172 = vmatpush.bf16.msra.mxu0 %v951
        %1173 = vmatpush.bf16.msra.mxu0 %v950
        %1174 = vmatpush.bf16.msra.mxu0 %v949
        %1175 = vmatpush.bf16.msra.mxu0 %v948
        %1176 = vmatpush.bf16.msra.mxu0 %v947
        %1177 = vmatpush.bf16.msra.mxu0 %v946
        %1178 = vmatpush.bf16.msra.mxu0 %v945
        %1179 = vmatpush.bf16.msra.mxu0 %v944
        %1180 = vmatmul.bf16.gmra.mxu0 %v556
        %v1181 = vpop.f32.mrf.mxu0
        %v1182 = vadd.f32 %v1153, %v1181
        %v1183 = vpop.f32.mrf.mxu0
        %v1184 = vadd.f32 %v1155, %v1183
        %1185 = vmatmul.bf16.gmra.mxu0 %v565
        %v1186 = vpop.f32.mrf.mxu0
        %v1187 = vadd.f32 %v1158, %v1186
        %v1188 = vpop.f32.mrf.mxu0
        %v1189 = vadd.f32 %v1160, %v1188
        %1190 = vmatmul.bf16.gmra.mxu0 %v574
        %v1191 = vpop.f32.mrf.mxu0
        %v1192 = vadd.f32 %v1163, %v1191
        %v1193 = vpop.f32.mrf.mxu0
        %v1194 = vadd.f32 %v1165, %v1193
        %1195 = vmatmul.bf16.gmra.mxu0 %v583
        %v1196 = vpop.f32.mrf.mxu0
        %v1197 = vadd.f32 %v1168, %v1196
        %v1198 = vpop.f32.mrf.mxu0
        %v1199 = vadd.f32 %v1170, %v1198
        %1200 = vdwg.mxu0
        %1201 = vmatpush.bf16.msra.mxu0 %v959
        %1202 = vmatpush.bf16.msra.mxu0 %v958
        %1203 = vmatpush.bf16.msra.mxu0 %v957
        %1204 = vmatpush.bf16.msra.mxu0 %v956
        %1205 = vmatpush.bf16.msra.mxu0 %v955
        %1206 = vmatpush.bf16.msra.mxu0 %v954
        %1207 = vmatpush.bf16.msra.mxu0 %v953
        %1208 = vmatpush.bf16.msra.mxu0 %v952
        %1209 = vmatmul.bf16.gmra.mxu0 %v557
        %v1210 = vpop.f32.mrf.mxu0
        %v1211 = vadd.f32 %v1182, %v1210
        %v1212 = vpop.f32.mrf.mxu0
        %v1213 = vadd.f32 %v1184, %v1212
        %1214 = vmatmul.bf16.gmra.mxu0 %v566
        %v1215 = vpop.f32.mrf.mxu0
        %v1216 = vadd.f32 %v1187, %v1215
        %v1217 = vpop.f32.mrf.mxu0
        %v1218 = vadd.f32 %v1189, %v1217
        %1219 = vmatmul.bf16.gmra.mxu0 %v575
        %v1220 = vpop.f32.mrf.mxu0
        %v1221 = vadd.f32 %v1192, %v1220
        %v1222 = vpop.f32.mrf.mxu0
        %v1223 = vadd.f32 %v1194, %v1222
        %1224 = vmatmul.bf16.gmra.mxu0 %v584
        %v1225 = vpop.f32.mrf.mxu0
        %v1226 = vadd.f32 %v1197, %v1225
        %v1227 = vpop.f32.mrf.mxu0
        %v1228 = vadd.f32 %v1199, %v1227
        %1229 = vdwg.mxu0
        %1230 = vmatpush.bf16.msra.mxu0 %v967
        %1231 = vmatpush.bf16.msra.mxu0 %v966
        %1232 = vmatpush.bf16.msra.mxu0 %v965
        %1233 = vmatpush.bf16.msra.mxu0 %v964
        %1234 = vmatpush.bf16.msra.mxu0 %v963
        %1235 = vmatpush.bf16.msra.mxu0 %v962
        %1236 = vmatpush.bf16.msra.mxu0 %v961
        %1237 = vmatpush.bf16.msra.mxu0 %v960
        %1238 = vmatmul.bf16.gmra.mxu0 %v558
        %v1239 = vpop.f32.mrf.mxu0
        %v1240 = vadd.f32 %v1211, %v1239
        %v1241 = vpop.f32.mrf.mxu0
        %v1242 = vadd.f32 %v1213, %v1241
        %1243 = vmatmul.bf16.gmra.mxu0 %v567
        %v1244 = vpop.f32.mrf.mxu0
        %v1245 = vadd.f32 %v1216, %v1244
        %v1246 = vpop.f32.mrf.mxu0
        %v1247 = vadd.f32 %v1218, %v1246
        %1248 = vmatmul.bf16.gmra.mxu0 %v576
        %v1249 = vpop.f32.mrf.mxu0
        %v1250 = vadd.f32 %v1221, %v1249
        %v1251 = vpop.f32.mrf.mxu0
        %v1252 = vadd.f32 %v1223, %v1251
        %1253 = vmatmul.bf16.gmra.mxu0 %v585
        %v1254 = vpop.f32.mrf.mxu0
        %v1255 = vadd.f32 %v1226, %v1254
        %v1256 = vpop.f32.mrf.mxu0
        %v1257 = vadd.f32 %v1228, %v1256
        %1258 = vdwg.mxu0
        %1259 = vmatpush.bf16.msra.mxu0 %v975
        %1260 = vmatpush.bf16.msra.mxu0 %v974
        %1261 = vmatpush.bf16.msra.mxu0 %v973
        %1262 = vmatpush.bf16.msra.mxu0 %v972
        %1263 = vmatpush.bf16.msra.mxu0 %v971
        %1264 = vmatpush.bf16.msra.mxu0 %v970
        %1265 = vmatpush.bf16.msra.mxu0 %v969
        %1266 = vmatpush.bf16.msra.mxu0 %v968
        %1267 = vmatmul.bf16.gmra.mxu0 %v559
        %v1268 = vpop.f32.mrf.mxu0
        %v1269 = vadd.f32 %v1240, %v1268
        %v1270 = vpop.f32.mrf.mxu0
        %v1271 = vadd.f32 %v1242, %v1270
        %1272 = vmatmul.bf16.gmra.mxu0 %v568
        %v1273 = vpop.f32.mrf.mxu0
        %v1274 = vadd.f32 %v1245, %v1273
        %v1275 = vpop.f32.mrf.mxu0
        %v1276 = vadd.f32 %v1247, %v1275
        %1277 = vmatmul.bf16.gmra.mxu0 %v577
        %v1278 = vpop.f32.mrf.mxu0
        %v1279 = vadd.f32 %v1250, %v1278
        %v1280 = vpop.f32.mrf.mxu0
        %v1281 = vadd.f32 %v1252, %v1280
        %1282 = vmatmul.bf16.gmra.mxu0 %v586
        %v1283 = vpop.f32.mrf.mxu0
        %v1284 = vadd.f32 %v1255, %v1283
        %v1285 = vpop.f32.mrf.mxu0
        %v1286 = vadd.f32 %v1257, %v1285
        %1287 = vdwg.mxu0
        %1288 = vmatpush.bf16.msra.mxu0 %v983
        %1289 = vmatpush.bf16.msra.mxu0 %v982
        %1290 = vmatpush.bf16.msra.mxu0 %v981
        %1291 = vmatpush.bf16.msra.mxu0 %v980
        %1292 = vmatpush.bf16.msra.mxu0 %v979
        %1293 = vmatpush.bf16.msra.mxu0 %v978
        %1294 = vmatpush.bf16.msra.mxu0 %v977
        %1295 = vmatpush.bf16.msra.mxu0 %v976
        %1296 = vmatmul.bf16.gmra.mxu0 %v560
        %v1297 = vpop.f32.mrf.mxu0
        %v1298 = vadd.f32 %v1269, %v1297
        %v1299 = vpop.f32.mrf.mxu0
        %v1300 = vadd.f32 %v1271, %v1299
        %1301 = vmatmul.bf16.gmra.mxu0 %v569
        %v1302 = vpop.f32.mrf.mxu0
        %v1303 = vadd.f32 %v1274, %v1302
        %v1304 = vpop.f32.mrf.mxu0
        %v1305 = vadd.f32 %v1276, %v1304
        %1306 = vmatmul.bf16.gmra.mxu0 %v578
        %v1307 = vpop.f32.mrf.mxu0
        %v1308 = vadd.f32 %v1279, %v1307
        %v1309 = vpop.f32.mrf.mxu0
        %v1310 = vadd.f32 %v1281, %v1309
        %1311 = vmatmul.bf16.gmra.mxu0 %v587
        %v1312 = vpop.f32.mrf.mxu0
        %v1313 = vadd.f32 %v1284, %v1312
        %v1314 = vpop.f32.mrf.mxu0
        %v1315 = vadd.f32 %v1286, %v1314
        %1316 = vdwg.mxu0
        %v1317 = vld [vmem:[%s2] sm:$0x1]
        %v1319 = vperm.slane %v1317, 0
        %v1321 = vmul.f32 %v1298, %v1319
        %v1322 = vmul.f32 %v1300, %v1319
        %v1323 = vmul.f32 %v1303, %v1319
        %v1324 = vmul.f32 %v1305, %v1319
        %v1325 = vmul.f32 %v1308, %v1319
        %v1326 = vmul.f32 %v1310, %v1319
        %v1327 = vmul.f32 %v1313, %v1319
        %v1328 = vmul.f32 %v1315, %v1319
        %v1329 = vld [vmem:[%s3] sm:$0x1]
        %v1331 = vperm.slane %v1329, 0
        %v1333 = vadd.f32 %v1321, %v1331
        %v1334 = vadd.f32 %v1322, %v1331
        %v1335 = vadd.f32 %v1323, %v1331
        %v1336 = vadd.f32 %v1324, %v1331
        %v1337 = vadd.f32 %v1325, %v1331
        %v1338 = vadd.f32 %v1326, %v1331
        %v1339 = vadd.f32 %v1327, %v1331
        %v1340 = vadd.f32 %v1328, %v1331
        %v1341 = vmax.f32 %v1333, 0.0
        %v1342 = vmax.f32 %v1334, 0.0
        %v1343 = vmax.f32 %v1335, 0.0
        %v1344 = vmax.f32 %v1336, 0.0
        %v1345 = vmax.f32 %v1337, 0.0
        %v1346 = vmax.f32 %v1338, 0.0
        %v1347 = vmax.f32 %v1339, 0.0
        %v1348 = vmax.f32 %v1340, 0.0
        %v1349 = vpack.c.bf16 %v1341, %v1341
        %v1350 = vpack.c.bf16 %v1342, %v1342
        %v1351 = vpack.c.bf16 %v1343, %v1343
        %v1352 = vpack.c.bf16 %v1344, %v1344
        %v1353 = vpack.c.bf16 %v1345, %v1345
        %v1354 = vpack.c.bf16 %v1346, %v1346
        %v1355 = vpack.c.bf16 %v1347, %v1347
        %v1356 = vpack.c.bf16 %v1348, %v1348
        %1357 = vst [vmem:[%s253] sm:$0xf] %v1349
        %1358 = vst [vmem:[%s253 + $0x4] sm:$0xf] %v1350
        %1359 = vst [vmem:[%s253 + $0x8] sm:$0xf] %v1351
        %1360 = vst [vmem:[%s253 + $0xc] sm:$0xf] %v1352
        %1361 = vst [vmem:[%s253 + $0x10] sm:$0xf] %v1353
        %1362 = vst [vmem:[%s253 + $0x14] sm:$0xf] %v1354
        %1363 = vst [vmem:[%s253 + $0x18] sm:$0xf] %v1355
        %1364 = vst [vmem:[%s253 + $0x1c] sm:$0xf] %v1356
        %s1365 = sand.u32 %s135, 1
        %s1366 = scalar_lea.sflag [#allocation4], %s1365
        %s1367 = sand.u32 %s135, 1
        %s1368 = smul.addr %s1367, 32
        %s1369 = scalar_lea.vmem [#allocation7], %s1368
        // Predicated region
        $region45: #{tpu_custom_call.1} parent=35 // pred_check
          %p1370 = pneg %p145
        $region46: #{tpu_custom_call.1} parent=35 // pred_check_branch
          %1372 = sbr.rel (%p1370) target = $region48
        $region47: #{tpu_custom_call.1} parent=35 // pred_region
          %s1373 = smul.u32 8, %s27
          %1375 = vsyncadd %s1366, 0
          %s1376 = smul.addr %s26, 8
          %s1377 = sadd.s32 %s1373, %s1376
          %s1378 = smul.addr %s1377, 4
          %s1379 = scalar_lea.hbm %s4, %s1378
          %s1380 = sshll.u32 %s1369, 4
          %s1381 = int_to_ptr.vmem [resolvable:$true] %s1380
          %s1382 = sshll.u32 %s1379, 4
          %s1383 = int_to_ptr.hbm [resolvable:$true] %s1382
          %1388 = dma.vmem_to_hbm [thread:$0]  %s1381, 512, %s1383, %s1366, 64, 64, 4
        $region48: #{tpu_custom_call.1} parent=35 // pred_fallthru
          _
      $region36: #{tpu_custom_call.1} parent=5 // pred_fallthru
        _
      %p1389 = scmp.le.s32.totalorder 2, %s17
      // Predicated region
      $region49: #{tpu_custom_call.1} parent=5 // pred_check
        %p1390 = pneg %p1389
      $region50: #{tpu_custom_call.1} parent=5 // pred_check_branch
        %1392 = sbr.rel (%p1390) target = $region52
      $region51: #{tpu_custom_call.1} parent=5 // pred_region
        %s1393 = ssub.s32 %s17, 2
        // Predicated region
        $region53: #{tpu_custom_call.1} parent=51 // pred_check
          %p1394 = pneg %p151
        $region54: #{tpu_custom_call.1} parent=51 // pred_check_branch
          %1396 = sbr.rel (%p1394) target = $region56
        $region55: #{tpu_custom_call.1} parent=51 // pred_region
          %s1397 = sand.u32 %s136, 1
          %s1398 = scalar_lea.sflag [#allocation4], %s1397
          %s1399 = sand.u32 %s136, 1
          %s1400 = smul.addr %s1399, 32
          %s1401 = scalar_lea.vmem [#allocation7], %s1400
          %1403 = dma.done %s1398, 512
        $region56: #{tpu_custom_call.1} parent=51 // pred_fallthru
          _
      $region52: #{tpu_custom_call.1} parent=5 // pred_fallthru
        _
    $region6: #{tpu_custom_call.1} parent=1 // loop_footer
      %s21 = sadd.s32 1, %s17
    $region7: #{tpu_custom_call.1} parent=1 // loop_footer_branch
      %16 = sbr.rel target = $region3
    $region8: #{tpu_custom_call.1} parent=1 // loop_exit
      _
    %1404 = vsyncpa [#allocation3], 1
    %s1405 = scalar_lea.sflag [#allocation3], 1
    %1406 = vsyncpa %s1405, 1
    %1407 = vsyncpa [#allocation6], 1
    %1408 = vsyncpa [#allocation4], 1
    %s1409 = scalar_lea.sflag [#allocation4], 1
    %1410 = vsyncpa %s1409, 1

</llo_original>
